<compile_context>
chip_gen: v5e
topology: v5e:2x2
jax: 0.10.0
libtpu: 0.0.40
codegen_flags: <defaults>
</compile_context>

<pallas_src>
import jax
import jax.numpy as jnp
from jax import lax
from jax.experimental import pallas as pl
from jax.experimental.pallas import tpu as pltpu


def _linear_kernel(x_ref, w_ref, b_ref, o_ref):
    # x_ref: (TM, K) tile of the flattened input (streamed)
    # w_ref: (N, K)  weight in native nn.Linear layout (VMEM-resident)
    # b_ref: (1, N)  bias, pre-cast to f32 (VMEM-resident)
    # o_ref: (TM, N) output tile
    acc = lax.dot_general(
        x_ref[...],
        w_ref[...],
        dimension_numbers=(((1,), (1,)), ((), ())),  # contract K with K, no transpose op
        preferred_element_type=jnp.float32,
    )
    acc = acc + b_ref[...]
    o_ref[...] = acc.astype(o_ref.dtype)


def _round_up(x, m):
    return ((x + m - 1) // m) * m


def output_forward(x, weight, bias, *, max_tile_m=1024):
    """Equivalent of Output.forward: x @ weight.T + bias.

    x:      (..., input_embeding_units)
    weight: (in_channels, input_embeding_units)   -- PyTorch nn.Linear layout
    bias:   (in_channels,)
    returns (..., in_channels)
    """
    *lead, K = x.shape
    N, K_w = weight.shape
    assert K == K_w, f"hidden mismatch: x has {K}, weight has {K_w}"

    M = 1
    for d in lead:
        M *= d
    x2d = x.reshape(M, K)

    # --- VMEM-aware row-tile choice --------------------------------------
    # Budget (f32 worst case): 2*TM*K*4 (double-buffered x) + 2*TM*N*4
    # (double-buffered out) + N*K*4 (resident W) + N*4 (bias).
    # Keep comfortably under the scoped default (16 MiB v5e / 32 MiB v6e,v7x).
    vmem_budget = 12 * 1024 * 1024
    bytes_per_row = 2 * 4 * (K + N)  # double-buffered x row + out row, f32
    tm_cap = max(8, (vmem_budget - 4 * N * (K + 1)) // max(bytes_per_row, 1))
    tm = min(max_tile_m, tm_cap, _round_up(M, 8))
    tm = max(8, (tm // 8) * 8)  # sublane-aligned

    m_pad = _round_up(M, tm)
    if m_pad != M:
        x2d = jnp.pad(x2d, ((0, m_pad - M), (0, 0)))

    b2d = bias.reshape(1, N).astype(jnp.float32)

    cost = pl.CostEstimate(
        flops=2 * m_pad * N * K,
        transcendentals=0,
        bytes_accessed=(
            m_pad * K * x2d.dtype.itemsize
            + N * K * weight.dtype.itemsize
            + N * 4
            + m_pad * N * x.dtype.itemsize
        ),
    )

    out2d = pl.pallas_call(
        _linear_kernel,
        out_shape=jax.ShapeDtypeStruct((m_pad, N), x.dtype),
        grid_spec=pl.GridSpec(
            grid=(m_pad // tm,),
            in_specs=[
                pl.BlockSpec((tm, K), lambda i: (i, 0)),   # streamed x tiles
                pl.BlockSpec((N, K), lambda i: (0, 0)),    # weight: VMEM-resident
                pl.BlockSpec((1, N), lambda i: (0, 0)),    # bias: VMEM-resident
            ],
            out_specs=pl.BlockSpec((tm, N), lambda i: (i, 0)),
        ),
        compiler_params=pltpu.CompilerParams(
            dimension_semantics=("parallel",),             # megacore sharding on v7x
        ),
        cost_estimate=cost,
    )(x2d, weight, b2d)

    if m_pad != M:
        out2d = out2d[:M]
    return out2d.reshape(*lead, N)


if __name__ == "__main__":
    # Module config: input_embeding_units (hidden) -> in_channels
    input_embeding_units = 32
    in_channels = 4
    batch, seq = 2, 8

    key = jax.random.PRNGKey(0)
    kx, kw, kb = jax.random.split(key, 3)

    # Deterministic synthetic parameters (PyTorch nn.Linear-style uniform init).
    bound = 1.0 / (input_embeding_units ** 0.5)
    weight = jax.random.uniform(
        kw, (in_channels, input_embeding_units), jnp.float32, -bound, bound
    )
    bias = jax.random.uniform(kb, (in_channels,), jnp.float32, -bound, bound)

    x = jax.random.normal(kx, (batch, seq, input_embeding_units), jnp.float32)

    y = output_forward(x, weight, bias)
    y = jax.block_until_ready(y)

    # Sanity check vs. plain JAX reference.
    y_ref = x @ weight.T + bias
    assert y.shape == (batch, seq, in_channels)
    assert jnp.allclose(y, y_ref, atol=1e-5, rtol=1e-5)

    print("KERNEL_OK")
</pallas_src>

<mosaic_0001>
module attributes {stable_mosaic.version = 11 : i64} {
  func.func @_linear_kernel(%arg0: i32, %arg1: memref<16x32xf32, #tpu.memory_space<vmem>>, %arg2: memref<4x32xf32, #tpu.memory_space<vmem>>, %arg3: memref<1x4xf32, #tpu.memory_space<vmem>>, %arg4: memref<16x4xf32, #tpu.memory_space<vmem>>) attributes {dimension_semantics = [#tpu.dimension_semantics<parallel>], iteration_bounds = array<i64: 1>, scalar_prefetch = 0 : i64, scratch_operands = 0 : i64, tpu.core_type = #tpu.core_type<tc>, window_params = [{transform_indices = @transform_0, window_bounds = array<i64: 16, 32>}, {pipeline_mode = #tpu.pipeline_mode<synchronous>, transform_indices = @transform_1, window_bounds = array<i64: 4, 32>}, {pipeline_mode = #tpu.pipeline_mode<synchronous>, transform_indices = @transform_2, window_bounds = array<i64: 1, 4>}, {transform_indices = @transform_3, window_bounds = array<i64: 16, 4>}]} {
    %c0 = arith.constant 0 : index
    %c0_0 = arith.constant 0 : index
    %0 = vector.load %arg1[%c0, %c0_0] : memref<16x32xf32, #tpu.memory_space<vmem>>, vector<16x32xf32>
    %c0_1 = arith.constant 0 : index
    %c0_2 = arith.constant 0 : index
    %1 = vector.load %arg2[%c0_1, %c0_2] : memref<4x32xf32, #tpu.memory_space<vmem>>, vector<4x32xf32>
    %cst = arith.constant dense<0.000000e+00> : vector<16x4xf32>
    %2 = tpu.matmul %0, %1, %cst {dimension_numbers = #tpu.dot_dimension_numbers<[1], [1], [0], [0], [0, 0, 1, 0], [], []>} : vector<16x32xf32>, vector<4x32xf32>, vector<16x4xf32> -> vector<16x4xf32>
    %c0_3 = arith.constant 0 : index
    %c0_4 = arith.constant 0 : index
    %3 = vector.load %arg3[%c0_3, %c0_4] : memref<1x4xf32, #tpu.memory_space<vmem>>, vector<1x4xf32>
    %4 = vector.broadcast %3 : vector<1x4xf32> to vector<16x4xf32>
    %5 = arith.addf %2, %4 : vector<16x4xf32>
    %c0_5 = arith.constant 0 : index
    %c0_6 = arith.constant 0 : index
    %6 = vector.load %arg4[%c0_5, %c0_6] : memref<16x4xf32, #tpu.memory_space<vmem>>, vector<16x4xf32>
    tpu.vector_store %arg4[%c0_5, %c0_6], %5 {strides = array<i32>} : memref<16x4xf32, #tpu.memory_space<vmem>>, vector<16x4xf32>,
    return
  }
  func.func @transform_0(%arg0: i32) -> (i32, i32) {
    %c0_i32 = arith.constant 0 : i32
    %c0_i32_0 = arith.constant 0 : i32
    return %arg0, %c0_i32 : i32, i32
  }
  func.func @transform_1(%arg0: i32) -> (i32, i32) {
    %c0_i32 = arith.constant 0 : i32
    %c0_i32_0 = arith.constant 0 : i32
    %c0_i32_1 = arith.constant 0 : i32
    return %c0_i32, %c0_i32_0 : i32, i32
  }
  func.func @transform_2(%arg0: i32) -> (i32, i32) {
    %c0_i32 = arith.constant 0 : i32
    %c0_i32_0 = arith.constant 0 : i32
    %c0_i32_1 = arith.constant 0 : i32
    return %c0_i32, %c0_i32_0 : i32, i32
  }
  func.func @transform_3(%arg0: i32) -> (i32, i32) {
    %c0_i32 = arith.constant 0 : i32
    %c0_i32_0 = arith.constant 0 : i32
    return %arg0, %c0_i32 : i32, i32
  }
}

</mosaic_0001>

<llo_original>
// kernel: tpu_custom_call.1
$region0: #{tpu_custom_call.1}
  #allocation0 [shape = 'u32[]', space=smem, size = 0x4, offset = 0x4, fixed_abs, tag = 'smem constant byte address 0x4 - core index']
  #allocation1 [shape = 'u32[72,128]{1,0:T(1,128)}', space=vmem, size = 0x9000, scoped, tag = 'internal scratch']
  %s0 = inlined_call_operand.hbm [shape: f32[16,32], index: 0, kind: input, shape index: {}]
  %s1 = inlined_call_operand.hbm [shape: f32[4,32], index: 1, kind: input, shape index: {}]
  %s2 = inlined_call_operand.vmem [shape: f32[1,4], index: 2, kind: input, shape index: {}]
  %s3 = inlined_call_operand.vmem [shape: f32[16,4], index: 3, kind: output, shape index: {}]
  %s4 = sld [smem:[#allocation0]]
  $region30: #{tpu_custom_call.1} parent=0
    _
  %s6 = ssub.s32 1, %s4
  %s7 = scalar_select 0, %s6, %s4
  $region1: #{tpu_custom_call.1} parent=0
    #allocation2 [shape = 'u8[8192]{0}', space=vmem, size = 0x2000, scoped, tag = 'input window, operand 0, single buffered']
    #allocation3 [shape = 's32[1]{0}', space=sflag, size = 0x4, scoped, tag = 'scoped memory for tpu_custom_call.1']
    #allocation4 [shape = 'u8[2048]{0}', space=vmem, size = 0x800, scoped, tag = 'input window, operand 1, single buffered']
    #allocation5 [shape = 's32[1]{0}', space=sflag, size = 0x4, scoped, tag = 'scoped memory for tpu_custom_call.1']
    %8 = vsyncpa [#allocation3], 0
    %9 = vsyncpa [#allocation5], 0
    // Predicated region
    $region2: #{tpu_custom_call.1} parent=1 // pred_check
      _
    $region3: #{tpu_custom_call.1} parent=1 // pred_check_branch
      %11 = sbr.rel (0) target = $region5
    $region4: #{tpu_custom_call.1} parent=1 // pred_region
      %13 = vsyncadd [#allocation3], 0
      %s14 = sshll.u32 %s0, 4
      %s15 = int_to_ptr.hbm [resolvable:$true] %s14
      %s16 = sshll.u32 [#allocation2], 4
      %s17 = int_to_ptr.vmem [resolvable:$true] %s16
      %22 = dma.hbm_to_vmem [thread:$0]  %s15, 256, %s17, [#allocation3], 128, 128, 8
    $region5: #{tpu_custom_call.1} parent=1 // pred_fallthru
      _
    // Predicated region
    $region6: #{tpu_custom_call.1} parent=1 // pred_check
      _
    $region7: #{tpu_custom_call.1} parent=1 // pred_check_branch
      %24 = sbr.rel (0) target = $region9
    $region8: #{tpu_custom_call.1} parent=1 // pred_region
      %26 = vsyncadd [#allocation5], 0
      %s28 = sshll.u32 %s1, 4
      %s29 = int_to_ptr.hbm [resolvable:$true] %s28
      %s30 = sshll.u32 [#allocation4], 4
      %s31 = int_to_ptr.vmem [resolvable:$true] %s30
      %33 = dma.hbm_to_vmem [thread:$0]  %s29, 64, %s31, [#allocation5]
    $region9: #{tpu_custom_call.1} parent=1 // pred_fallthru
      _
    // Predicated region
    $region10: #{tpu_custom_call.1} parent=1 // pred_check
      _
    $region11: #{tpu_custom_call.1} parent=1 // pred_check_branch
      %35 = sbr.rel (0) target = $region13
    $region12: #{tpu_custom_call.1} parent=1 // pred_region
      _
    $region13: #{tpu_custom_call.1} parent=1 // pred_fallthru
      _
    // Predicated region
    $region14: #{tpu_custom_call.1} parent=1 // pred_check
      _
    $region15: #{tpu_custom_call.1} parent=1 // pred_check_branch
      %37 = sbr.rel (0) target = $region17
    $region16: #{tpu_custom_call.1} parent=1 // pred_region
      %39 = dma.done [#allocation3], 256
    $region17: #{tpu_custom_call.1} parent=1 // pred_fallthru
      _
    // Predicated region
    $region18: #{tpu_custom_call.1} parent=1 // pred_check
      _
    $region19: #{tpu_custom_call.1} parent=1 // pred_check_branch
      %41 = sbr.rel (0) target = $region21
    $region20: #{tpu_custom_call.1} parent=1 // pred_region
      %43 = dma.done [#allocation5], 64
    $region21: #{tpu_custom_call.1} parent=1 // pred_fallthru
      _
    %v44 = vld [vmem:[#allocation2] sm:$0xff]
    %v45 = vld [vmem:[#allocation2 + $0x8] sm:$0xff]
    %v46 = vld [vmem:[#allocation4] sm:$0xf]
    %v47 = vld [vmem:[%s2] sm:$0x1]
    %v49 = vperm.slane %v47, 0
    %vm51 = vcmask 261120
    %v53 = vsel %vm51, %v44, 0
    %v56 = vsel %vm51, %v45, 0
    %v59 = vsel %vm51, %v46, 0
    %61 = vmatpush.xpose.msra.mxu0 0.0
    %62 = vmatpush.xpose.msra.mxu0 0.0
    %63 = vmatpush.xpose.msra.mxu0 0.0
    %64 = vmatpush.xpose.msra.mxu0 0.0
    %65 = vmatpush.xpose.msra.mxu0 0.0
    %66 = vmatpush.xpose.msra.mxu0 0.0
    %67 = vmatpush.xpose.msra.mxu0 0.0
    %68 = vmatpush.xpose.msra.mxu0 0.0
    %69 = vmatpush.xpose.msra.mxu0 0.0
    %70 = vmatpush.xpose.msra.mxu0 0.0
    %71 = vmatpush.xpose.msra.mxu0 0.0
    %72 = vmatpush.xpose.msra.mxu0 0.0
    %73 = vmatpush.xpose.msra.mxu0 0.0
    %74 = vmatpush.xpose.msra.mxu0 0.0
    %75 = vmatpush.xpose.msra.mxu0 0.0
    %76 = vmatpush.xpose.msra.mxu0 %v59
    %77 = vmatmul.f32.gmra.mxu0 %v53
    %v78 = vpop.f32.mrf.mxu0
    %v79 = vadd.f32 %v49, %v78
    %80 = vmatmul.f32.gmra.mxu0 %v56
    %v81 = vpop.f32.mrf.mxu0
    %v82 = vadd.f32 %v49, %v81
    %83 = vdwg.mxu0
    %vm84 = vcmask 31744
    %85 = vst.msk [vmem:[%s3] sm:$0xff] %vm84, %v79
    %86 = vst.msk [vmem:[%s3 + $0x8] sm:$0xff] %vm84, %v82
    // Predicated region
    $region22: #{tpu_custom_call.1} parent=1 // pred_check
      _
    $region23: #{tpu_custom_call.1} parent=1 // pred_check_branch
      %88 = sbr.rel (0) target = $region25
    $region24: #{tpu_custom_call.1} parent=1 // pred_region
      _
    $region25: #{tpu_custom_call.1} parent=1 // pred_fallthru
      _
    // Predicated region
    $region26: #{tpu_custom_call.1} parent=1 // pred_check
      _
    $region27: #{tpu_custom_call.1} parent=1 // pred_check_branch
      %90 = sbr.rel (0) target = $region29
    $region28: #{tpu_custom_call.1} parent=1 // pred_region
      _
    $region29: #{tpu_custom_call.1} parent=1 // pred_fallthru
      _
    %91 = vsyncpa [#allocation3], 1
    %92 = vsyncpa [#allocation5], 1

</llo_original>
